<compile_context>
chip_gen: v5e
topology: v5e:2x2
jax: 0.10.0
libtpu: 0.0.40
codegen_flags: <defaults>
</compile_context>

<pallas_src>
import functools
import math

import jax
import jax.numpy as jnp
from jax.experimental import pallas as pl
from jax.experimental.pallas import tpu as pltpu


def _col_sum_kernel(x_ref, out_ref, *, block_rows, m_rows, inner_steps, ragged):
    """Accumulates column sums of the (block_rows, width) tile into out_ref."""
    s = pl.program_id(0)   # shard (parallel)
    i = pl.program_id(1)   # streaming reduction step (arbitrary)

    @pl.when(i == 0)
    def _init():
        out_ref[...] = jnp.zeros_like(out_ref)

    x = x_ref[...].astype(jnp.float32)            # (block_rows, width)

    if not ragged:
        # Every block is fully in bounds: unmasked accumulate only.
        out_ref[...] += jnp.sum(x, axis=0, keepdims=True)[None]
    else:
        nominal = s * inner_steps + i             # nominal block index
        is_edge = (nominal + 1) * block_rows > m_rows

        @pl.when(jnp.logical_not(is_edge))
        def _full_block():
            out_ref[...] += jnp.sum(x, axis=0, keepdims=True)[None]

        @pl.when(is_edge)
        def _edge_block():
            # Partial last block, or a clamped duplicate block past the shard
            # split: mask by nominal global row id so OOB/duplicate rows add 0.
            row_ids = nominal * block_rows + jax.lax.broadcasted_iota(
                jnp.int32, x.shape, 0)
            xm = jnp.where(row_ids < m_rows, x, 0.0)
            out_ref[...] += jnp.sum(xm, axis=0, keepdims=True)[None]


def _class_balance_loss_ref(p: jax.Array) -> jax.Array:
    # Pure-JAX reference mirroring F.binary_cross_entropy semantics.
    c = p.shape[1]
    p_mean = jnp.mean(p.astype(jnp.float32), axis=0)
    u = jnp.float32(1.0 / c)
    log_p = jnp.maximum(jnp.log(p_mean), -100.0)
    log_1mp = jnp.maximum(jnp.log(1.0 - p_mean), -100.0)
    return jnp.mean(-(u * log_p + (1.0 - u) * log_1mp))


def _num_tensorcores() -> int:
    """Best-effort TensorCore count (v7x has 2); falls back to 1."""
    try:
        info = pltpu.get_tpu_info()
    except Exception:
        return 1
    for name in ("num_cores", "core_count", "num_tensorcores", "tensor_cores"):
        v = getattr(info, name, None)
        if isinstance(v, int) and v >= 1:
            return v
    return 1


def class_balance_loss(p: jax.Array, *, max_block_rows: int | None = None,
                       num_shards: int | None = None,
                       prefer_pallas: bool | None = None) -> jax.Array:
    """p: (N, C) probabilities (f32 or bf16). Returns scalar f32 loss."""
    n, c = p.shape

    if prefer_pallas is None:
        # Below ~0.5M elements a fused XLA reduce beats Pallas launch overhead.
        prefer_pallas = n * c >= (1 << 19)
    if not prefer_pallas:
        return _class_balance_loss_ref(p)

    # --- Lane densification: fold k rows into the lane axis (zero-copy). ---
    k = 128 // math.gcd(c, 128)        # power of two
    while k > 1 and n % k != 0:        # keep the reshape exact
        k //= 2
    width = c * k
    m = n // k
    x = p.reshape(m, width) if k > 1 else p

    # --- Row tiling from a VMEM byte budget (generation-safe). ---
    itemsize = jnp.dtype(x.dtype).itemsize
    sub = {4: 8, 2: 16, 1: 32}.get(itemsize, 8)   # sublane multiple per dtype
    budget_bytes = 4 << 20                        # per input buffer (x2 double buffered)
    rows_budget = max(sub, (budget_bytes // (width * itemsize)) // sub * sub)
    if max_block_rows is not None:
        rows_budget = max(sub, min(rows_budget, (max_block_rows // sub) * sub))
    block_rows = m if m <= rows_budget else rows_budget
    num_blocks = pl.cdiv(m, block_rows)

    # --- Shard the reduction across TensorCores (leading "parallel" axis). ---
    if num_shards is None:
        num_shards = _num_tensorcores()
    num_shards = max(1, min(num_shards, num_blocks))
    inner_steps = pl.cdiv(num_blocks, num_shards)

    ragged = (m % block_rows != 0) or (num_blocks % num_shards != 0)

    def x_index(s, i):
        b = s * inner_steps + i
        if ragged:
            # Clamp nominal blocks past the end to a valid block; their
            # contribution is fully masked out in-kernel.
            b = jnp.minimum(b, num_blocks - 1)
        return (b, 0)

    kernel = functools.partial(
        _col_sum_kernel, block_rows=block_rows, m_rows=m,
        inner_steps=inner_steps, ragged=ragged)

    partials = pl.pallas_call(
        kernel,
        out_shape=jax.ShapeDtypeStruct((num_shards, 1, width), jnp.float32),
        grid_spec=pltpu.PrefetchScalarGridSpec(
            num_scalar_prefetch=0,
            grid=(num_shards, inner_steps),
            in_specs=[pl.BlockSpec((block_rows, width), x_index)],
            out_specs=pl.BlockSpec((1, 1, width), lambda s, i: (s, 0, 0)),
        ),
        compiler_params=pltpu.CompilerParams(
            dimension_semantics=("parallel", "arbitrary")),
        cost_estimate=pl.CostEstimate(
            flops=int(n) * int(c), transcendentals=0,
            bytes_accessed=int(n) * int(c) * int(itemsize)
                           + int(num_shards) * int(width) * 4),
    )(x)

    # --- Tiny epilogue in the wrapper (XLA fuses this for free). ---
    col_sum = jnp.sum(partials, axis=(0, 1))            # (width,)
    class_sum = jnp.sum(col_sum.reshape(k, c), axis=0)  # (C,)
    p_mean = class_sum * jnp.float32(1.0 / n)
    u = jnp.float32(1.0 / c)
    log_p = jnp.maximum(jnp.log(p_mean), -100.0)        # PyTorch's -100 log clamp
    log_1mp = jnp.maximum(jnp.log(1.0 - p_mean), -100.0)
    return jnp.mean(-(u * log_p + (1.0 - u) * log_1mp))


if __name__ == "__main__":
    key = jax.random.PRNGKey(0)
    k1, k2, k3, k4 = jax.random.split(key, 4)

    # Case 1: C divides 128 -> fully lane-dense (width=128), single block.
    p1 = jax.nn.softmax(jax.random.normal(k1, (64, 8), dtype=jnp.float32), axis=-1)
    loss1 = class_balance_loss(p1, prefer_pallas=True)
    jax.block_until_ready(loss1)
    ref1 = _class_balance_loss_ref(p1)
    assert jnp.allclose(loss1, ref1, atol=1e-5, rtol=1e-5), (loss1, ref1)

    # Case 2: C=10 (does not divide 128) -> lcm-style densification to width=80,
    # multi-block streaming, 2 shards, ragged last block (masked edge path).
    p2 = jax.nn.softmax(jax.random.normal(k2, (200, 10), dtype=jnp.float32), axis=-1)
    loss2 = class_balance_loss(p2, max_block_rows=8, num_shards=2, prefer_pallas=True)
    jax.block_until_ready(loss2)
    ref2 = _class_balance_loss_ref(p2)
    assert jnp.allclose(loss2, ref2, atol=1e-5, rtol=1e-5), (loss2, ref2)

    # Case 3: bf16 activations streamed directly; f32 accumulation in-kernel.
    p3 = jax.nn.softmax(jax.random.normal(k3, (256, 16), dtype=jnp.float32),
                        axis=-1).astype(jnp.bfloat16)
    loss3 = class_balance_loss(p3, max_block_rows=16, prefer_pallas=True)
    jax.block_until_ready(loss3)
    ref3 = _class_balance_loss_ref(p3)
    assert jnp.allclose(loss3, ref3, atol=1e-4, rtol=1e-4), (loss3, ref3)

    # Case 4: odd block count with 2 shards -> exercises the clamped
    # out-of-range nominal block (fully masked) plus the ragged last block.
    p4 = jax.nn.softmax(jax.random.normal(k4, (312, 10), dtype=jnp.float32), axis=-1)
    loss4 = class_balance_loss(p4, max_block_rows=8, num_shards=2, prefer_pallas=True)
    jax.block_until_ready(loss4)
    ref4 = _class_balance_loss_ref(p4)
    assert jnp.allclose(loss4, ref4, atol=1e-5, rtol=1e-5), (loss4, ref4)

    print("KERNEL_OK")
</pallas_src>

<mosaic_0001>
module attributes {stable_mosaic.version = 11 : i64} {
  func.func @_col_sum_kernel(%arg0: i32, %arg1: i32, %arg2: memref<4x128xf32, #tpu.memory_space<vmem>>, %arg3: memref<1x1x128xf32, #tpu.memory_space<vmem>>) attributes {dimension_semantics = [#tpu.dimension_semantics<parallel>, #tpu.dimension_semantics<arbitrary>], iteration_bounds = array<i64: 1, 1>, scalar_prefetch = 0 : i64, scratch_operands = 0 : i64, tpu.core_type = #tpu.core_type<tc>, window_params = [{transform_indices = @transform_0, window_bounds = array<i64: 4, 128>}, {transform_indices = @transform_1, window_bounds = array<i64: 1, 1, 128>}]} {
    %c0_i32 = arith.constant 0 : i32
    %0 = arith.cmpi eq, %arg1, %c0_i32 : i32
    %1 = arith.extui %0 : i1 to i32
    %c0_i32_0 = arith.constant 0 : i32
    %2 = arith.cmpi ne, %1, %c0_i32_0 : i32
    scf.if %2 {
      %cst_8 = arith.constant 0.000000e+00 : f32
      %10 = vector.broadcast %cst_8 : f32 to vector<1x1x128xf32>
      %c0_9 = arith.constant 0 : index
      %c0_10 = arith.constant 0 : index
      %c0_11 = arith.constant 0 : index
      %11 = vector.load %arg3[%c0_9, %c0_10, %c0_11] : memref<1x1x128xf32, #tpu.memory_space<vmem>>, vector<1x1x128xf32>
      tpu.vector_store %arg3[%c0_9, %c0_10, %c0_11], %10 {strides = array<i32>} : memref<1x1x128xf32, #tpu.memory_space<vmem>>, vector<1x1x128xf32>,
    } else {
    }
    %c0 = arith.constant 0 : index
    %c0_1 = arith.constant 0 : index
    %3 = vector.load %arg2[%c0, %c0_1] : memref<4x128xf32, #tpu.memory_space<vmem>>, vector<4x128xf32>
    %c0_2 = arith.constant 0 : index
    %c0_3 = arith.constant 0 : index
    %c0_4 = arith.constant 0 : index
    %4 = vector.load %arg3[%c0_2, %c0_3, %c0_4] : memref<1x1x128xf32, #tpu.memory_space<vmem>>, vector<1x1x128xf32>
    %cst = arith.constant dense<0.000000e+00> : vector<128xf32>
    %5 = vector.multi_reduction <add>, %3, %cst [0] : vector<4x128xf32> to vector<128xf32>
    %6 = vector.shape_cast %5 : vector<128xf32> to vector<1x128xf32>
    %7 = vector.shape_cast %6 : vector<1x128xf32> to vector<1x1x128xf32>
    %8 = arith.addf %4, %7 : vector<1x1x128xf32>
    %c0_5 = arith.constant 0 : index
    %c0_6 = arith.constant 0 : index
    %c0_7 = arith.constant 0 : index
    %9 = vector.load %arg3[%c0_5, %c0_6, %c0_7] : memref<1x1x128xf32, #tpu.memory_space<vmem>>, vector<1x1x128xf32>
    tpu.vector_store %arg3[%c0_5, %c0_6, %c0_7], %8 {strides = array<i32>} : memref<1x1x128xf32, #tpu.memory_space<vmem>>, vector<1x1x128xf32>,
    return
  }
  func.func @transform_0(%arg0: i32, %arg1: i32) -> (i32, i32) {
    %c1_i32 = arith.constant 1 : i32
    %0 = arith.muli %arg0, %c1_i32 : i32
    %1 = arith.addi %0, %arg1 : i32
    %c0_i32 = arith.constant 0 : i32
    %c0_i32_0 = arith.constant 0 : i32
    return %1, %c0_i32 : i32, i32
  }
  func.func @transform_1(%arg0: i32, %arg1: i32) -> (i32, i32, i32) {
    %c0_i32 = arith.constant 0 : i32
    %c0_i32_0 = arith.constant 0 : i32
    %c0_i32_1 = arith.constant 0 : i32
    return %arg0, %c0_i32, %c0_i32_0 : i32, i32, i32
  }
}

</mosaic_0001>

<llo_original>
// kernel: tpu_custom_call.1
$region0: #{tpu_custom_call.1}
  #allocation0 [shape = 'u32[]', space=smem, size = 0x4, offset = 0x4, fixed_abs, tag = 'smem constant byte address 0x4 - core index']
  #allocation1 [shape = 'u32[72,128]{1,0:T(1,128)}', space=vmem, size = 0x9000, scoped, tag = 'internal scratch']
  %s0 = inlined_call_operand.hbm [shape: f32[4,128], index: 0, kind: input, shape index: {}]
  %s1 = inlined_call_operand.hbm [shape: f32[1,1,128], index: 1, kind: output, shape index: {}]
  %s2 = sld [smem:[#allocation0]]
  $region22: #{tpu_custom_call.1} parent=0
    _
  %s4 = ssub.s32 1, %s2
  %s5 = scalar_select 0, %s4, %s2
  $region1: #{tpu_custom_call.1} parent=0
    #allocation2 [shape = 'u8[2048]{0}', space=vmem, size = 0x800, scoped, tag = 'input window, operand 0, single buffered']
    #allocation3 [shape = 's32[1]{0}', space=sflag, size = 0x4, scoped, tag = 'scoped memory for tpu_custom_call.1']
    #allocation4 [shape = 's32[1]{0}', space=sflag, size = 0x4, scoped, tag = 'scoped memory for tpu_custom_call.1']
    #allocation5 [shape = 'u8[512]{0}', space=vmem, size = 0x400, scoped, tag = 'output window, operand 0, single buffered']
    %6 = vsyncpa [#allocation3], 0
    %7 = vsyncpa [#allocation4], 0
    // Predicated region
    $region2: #{tpu_custom_call.1} parent=1 // pred_check
      _
    $region3: #{tpu_custom_call.1} parent=1 // pred_check_branch
      %9 = sbr.rel (0) target = $region5
    $region4: #{tpu_custom_call.1} parent=1 // pred_region
      %s10 = sadd.s32 0, 0
      %12 = vsyncadd [#allocation3], 0
      %s13 = smul.addr %s10, 4
      %s14 = scalar_lea.hbm %s0, %s13
      %s16 = sshll.u32 %s14, 4
      %s17 = int_to_ptr.hbm [resolvable:$true] %s16
      %s18 = sshll.u32 [#allocation2], 4
      %s19 = int_to_ptr.vmem [resolvable:$true] %s18
      %21 = dma.hbm_to_vmem [thread:$0]  %s17, 64, %s19, [#allocation3]
    $region5: #{tpu_custom_call.1} parent=1 // pred_fallthru
      _
    // Predicated region
    $region6: #{tpu_custom_call.1} parent=1 // pred_check
      _
    $region7: #{tpu_custom_call.1} parent=1 // pred_check_branch
      %23 = sbr.rel (0) target = $region9
    $region8: #{tpu_custom_call.1} parent=1 // pred_region
      %25 = dma.done [#allocation3], 64
    $region9: #{tpu_custom_call.1} parent=1 // pred_fallthru
      _
    %s26 = sadd.s32 0, 0
    %p27 = scmp.eq.s32.totalorder 0, 0
    // Predicated region
    $region10: #{tpu_custom_call.1} parent=1 // pred_check
      %p28 = pneg %p27
    $region11: #{tpu_custom_call.1} parent=1 // pred_check_branch
      %30 = sbr.rel (%p28) target = $region13
    $region12: #{tpu_custom_call.1} parent=1 // pred_region
      %31 = vst [vmem:[#allocation5] sm:$0x1] 0.0
    $region13: #{tpu_custom_call.1} parent=1 // pred_fallthru
      _
    %v32 = vld [vmem:[#allocation2] sm:$0xf]
    %v33 = vld [vmem:[#allocation5] sm:$0x1]
    %vm34 = vcmask 1043456
    %v35 = vsel %vm34, %v32, 0.0
    %v36 = vrot.slane %v35, 4
    %v37 = vadd.f32 %v35, %v36
    %v38 = vrot.slane %v37, 2
    %v39 = vadd.f32 %v37, %v38
    %v40 = vrot.slane %v39, 1
    %v41 = vadd.f32 %v39, %v40
    %v42 = vadd.f32 %v33, %v41
    %43 = vst [vmem:[#allocation5] sm:$0x1] %v42
    // Predicated region
    $region14: #{tpu_custom_call.1} parent=1 // pred_check
      _
    $region15: #{tpu_custom_call.1} parent=1 // pred_check_branch
      %45 = sbr.rel (0) target = $region17
    $region16: #{tpu_custom_call.1} parent=1 // pred_region
      %47 = vsyncadd [#allocation4], 0
      %s49 = sshll.u32 [#allocation5], 4
      %s50 = int_to_ptr.vmem [resolvable:$true] %s49
      %s51 = sshll.u32 %s1, 4
      %s52 = int_to_ptr.hbm [resolvable:$true] %s51
      %54 = dma.vmem_to_hbm [thread:$0]  %s50, 16, %s52, [#allocation4]
    $region17: #{tpu_custom_call.1} parent=1 // pred_fallthru
      _
    // Predicated region
    $region18: #{tpu_custom_call.1} parent=1 // pred_check
      _
    $region19: #{tpu_custom_call.1} parent=1 // pred_check_branch
      %56 = sbr.rel (0) target = $region21
    $region20: #{tpu_custom_call.1} parent=1 // pred_region
      %58 = dma.done [#allocation4], 16
    $region21: #{tpu_custom_call.1} parent=1 // pred_fallthru
      _
    %59 = vsyncpa [#allocation3], 1
    %60 = vsyncpa [#allocation4], 1

</llo_original>
